<compile_context>
chip_gen: v7x
topology: tpu7x:2x2x1
jax: 0.10.0
libtpu: 0.0.40
codegen_flags: <defaults>
</compile_context>

<pallas_src>
import jax
import jax.numpy as jnp
from jax.experimental import pallas as pl
from jax.experimental.pallas import tpu as pltpu

SELU_ALPHA = 1.6732632423543772
SELU_SCALE = 1.0507009873554805
_LANE = 128


def _selu(x):
    # Negative branch uses exp(min(x, 0)) so large positives never hit exp.
    neg = SELU_ALPHA * (jnp.exp(jnp.minimum(x, 0.0)) - 1.0)
    return SELU_SCALE * jnp.where(x > 0.0, x, neg)


def mean_pooled_fc_kernel(x_ref, w1x_ref, w1p_ref, b1_ref, w2_ref, b2_ref,
                          w3_ref, b3_ref, o_ref):
    # x block: (TB, N, Din) -- TB whole batches, so the mean over N stays
    # per-batch even though the matmuls run on the flattened (TB*N, .) slab.
    x = x_ref[...]                                   # (TB, N, Din) f32
    TB, N, Din = x.shape

    w1x = w1x_ref[...]                               # (Din, H)
    w1p = w1p_ref[...]                               # (Din, H)
    cdt = w1x.dtype                                  # matmul input dtype

    pooled = jnp.mean(x, axis=1)                     # (TB, Din) per-batch pool
    x2d = x.reshape(TB * N, Din)                     # big-M slab for the MXU

    # Layer 1: split-W1 formulation (== concat([x, pooled]) @ W1 + b1).
    h = jnp.dot(x2d.astype(cdt), w1x,
                preferred_element_type=jnp.float32)              # (TB*N, H)
    ph = jnp.dot(pooled.astype(cdt), w1p,
                 preferred_element_type=jnp.float32)             # (TB, H)
    ph = ph + b1_ref[...]                                        # fold bias
    H = ph.shape[-1]
    ph_rows = jnp.broadcast_to(ph.reshape(TB, 1, H),
                               (TB, N, H)).reshape(TB * N, H)
    h = _selu(h + ph_rows)

    # Layer 2
    h = jnp.dot(h.astype(cdt), w2_ref[...],
                preferred_element_type=jnp.float32) + b2_ref[...]
    h = _selu(h)

    # Layer 3 (output columns padded to a lane-dense width in the wrapper)
    y = jnp.dot(h.astype(cdt), w3_ref[...],
                preferred_element_type=jnp.float32) + b3_ref[...]

    o_ref[...] = y.reshape(TB, N, -1).astype(o_ref.dtype)


def _pick_tb(B, N, Din, H, Dout_pad, target_rows=512, vmem_budget=24 << 20):
    """Largest divisor of B whose (double-buffered) tile fits the budget,
    stopping once TB*N reaches target_rows (enough to fill the MXU M dim)."""
    itemsize = 4
    best = 1
    for tb in range(1, B + 1):
        if B % tb:
            continue
        rows = tb * N
        x_bytes = 2 * rows * Din * itemsize          # double-buffered input
        o_bytes = 2 * rows * Dout_pad * itemsize     # double-buffered output
        h_bytes = 3 * rows * H * itemsize            # live f32 intermediates
        if x_bytes + o_bytes + h_bytes > vmem_budget:
            break
        best = tb
        if rows >= target_rows:
            break
    return best


def mean_pooled_fc(x, params, *, matmul_dtype=jnp.float32, target_rows=512):
    """x: (B, N, in_dim) float32. params: dict of weights/biases (see init_params).

    matmul_dtype=jnp.bfloat16 feeds bf16 to the MXU (recommended on v6e/v7x);
    biases, SELU and accumulation stay f32 either way.
    """
    B, N, Din = x.shape
    w1, b1 = params["w1"], params["b1"]
    w2, b2 = params["w2"], params["b2"]
    w3, b3 = params["w3"], params["b3"]
    H = w1.shape[1]
    Dout = w3.shape[1]

    # Lane-dense output: pad Dout up to a multiple of 128, slice afterwards.
    Dout_pad = ((Dout + _LANE - 1) // _LANE) * _LANE
    if Dout_pad != Dout:
        w3 = jnp.pad(w3, ((0, 0), (0, Dout_pad - Dout)))
        b3 = jnp.pad(b3, ((0, 0), (0, Dout_pad - Dout)))

    # Split W1 so the kernel never builds the (rows, 2*Din) concat.
    w1x = w1[:Din].astype(matmul_dtype)
    w1p = w1[Din:].astype(matmul_dtype)
    w2c = w2.astype(matmul_dtype)
    w3c = w3.astype(matmul_dtype)

    TB = _pick_tb(B, N, Din, H, Dout_pad, target_rows=target_rows)
    grid = (B // TB,)

    full = lambda a: pl.BlockSpec(a.shape, lambda b: (0,) * a.ndim)

    out_padded = pl.pallas_call(
        mean_pooled_fc_kernel,
        out_shape=jax.ShapeDtypeStruct((B, N, Dout_pad), x.dtype),
        grid_spec=pltpu.PrefetchScalarGridSpec(
            num_scalar_prefetch=0,
            grid=grid,
            in_specs=[
                # Streamed input: TB whole batches per grid step.
                pl.BlockSpec((TB, N, Din), lambda b: (b, 0, 0)),
                # Weights/biases: constant index_map -> resident across steps.
                full(w1x), full(w1p), full(b1),
                full(w2c), full(b2),
                full(w3c), full(b3),
            ],
            out_specs=pl.BlockSpec((TB, N, Dout_pad), lambda b: (b, 0, 0)),
        ),
        compiler_params=pltpu.CompilerParams(
            # Batch-tile axis is embarrassingly parallel (v7x megacore splits
            # it across its two TensorCores when the grid has >= 2 steps).
            dimension_semantics=("parallel",),
            # Explicit scoped-VMEM limit; tile budget above keeps us well under
            # v7x's 64 MiB physical VMEM.
            vmem_limit_bytes=48 * 1024 * 1024,
        ),
    )(x, w1x, w1p, b1, w2c, b2, w3c, b3)

    if Dout_pad != Dout:
        return out_padded[..., :Dout]
    return out_padded


def init_params(key, in_dim, hidden_dim, out_dim):
    """MeanPooledFC(in_dim, hidden_dim, out_dim, layers=2):
       MLP(2*in_dim, hidden_dim, out_dim, layers=2) ->
       Linear(2*in_dim, H), SELU, Linear(H, H), SELU, Linear(H, out_dim).
       Weights stored as (in, out): y = x @ W + b."""
    total_in = 2 * in_dim
    ks = jax.random.split(key, 6)
    scale = lambda fan_in: 1.0 / jnp.sqrt(fan_in)
    return {
        "w1": jax.random.normal(ks[0], (total_in, hidden_dim), jnp.float32) * scale(total_in),
        "b1": jax.random.normal(ks[1], (1, hidden_dim), jnp.float32) * 0.01,
        "w2": jax.random.normal(ks[2], (hidden_dim, hidden_dim), jnp.float32) * scale(hidden_dim),
        "b2": jax.random.normal(ks[3], (1, hidden_dim), jnp.float32) * 0.01,
        "w3": jax.random.normal(ks[4], (hidden_dim, out_dim), jnp.float32) * scale(hidden_dim),
        "b3": jax.random.normal(ks[5], (1, out_dim), jnp.float32) * 0.01,
    }


def mean_pooled_fc_ref(x, p):
    """Pure-JAX reference mirroring the PyTorch forward (concat formulation)."""
    pooled = jnp.mean(x, axis=1, keepdims=True)                  # (B,1,Din)
    xc = jnp.concatenate(
        [x, jnp.broadcast_to(pooled, x.shape)], axis=-1)         # (B,N,2*Din)
    h = _selu(xc @ p["w1"] + p["b1"])
    h = _selu(h @ p["w2"] + p["b2"])
    return h @ p["w3"] + p["b3"]


if __name__ == "__main__":
    B, N, in_dim, hidden_dim, out_dim = 2, 8, 16, 32, 8

    key = jax.random.PRNGKey(0)
    kx, kp = jax.random.split(key)
    x = jax.random.normal(kx, (B, N, in_dim), jnp.float32)
    params = init_params(kp, in_dim, hidden_dim, out_dim)

    out = mean_pooled_fc(x, params)          # f32 matmuls by default
    out = jax.block_until_ready(out)

    ref = mean_pooled_fc_ref(x, params)
    assert out.shape == (B, N, out_dim)
    assert jnp.allclose(out, ref, atol=1e-5, rtol=1e-5), "mismatch vs reference"

    print("KERNEL_OK")
</pallas_src>

<mosaic_0001>
module attributes {stable_mosaic.version = 11 : i64} {
  func.func @mean_pooled_fc_kernel(%arg0: i32, %arg1: memref<2x8x16xf32, #tpu.memory_space<vmem>>, %arg2: memref<16x32xf32, #tpu.memory_space<vmem>>, %arg3: memref<16x32xf32, #tpu.memory_space<vmem>>, %arg4: memref<1x32xf32, #tpu.memory_space<vmem>>, %arg5: memref<32x32xf32, #tpu.memory_space<vmem>>, %arg6: memref<1x32xf32, #tpu.memory_space<vmem>>, %arg7: memref<32x128xf32, #tpu.memory_space<vmem>>, %arg8: memref<1x128xf32, #tpu.memory_space<vmem>>, %arg9: memref<2x8x128xf32, #tpu.memory_space<vmem>>) attributes {dimension_semantics = [#tpu.dimension_semantics<parallel>], iteration_bounds = array<i64: 1>, scalar_prefetch = 0 : i64, scratch_operands = 0 : i64, tpu.core_type = #tpu.core_type<tc>, window_params = [{transform_indices = @transform_0, window_bounds = array<i64: 2, 8, 16>}, {pipeline_mode = #tpu.pipeline_mode<synchronous>, transform_indices = @transform_1, window_bounds = array<i64: 16, 32>}, {pipeline_mode = #tpu.pipeline_mode<synchronous>, transform_indices = @transform_2, window_bounds = array<i64: 16, 32>}, {pipeline_mode = #tpu.pipeline_mode<synchronous>, transform_indices = @transform_3, window_bounds = array<i64: 1, 32>}, {pipeline_mode = #tpu.pipeline_mode<synchronous>, transform_indices = @transform_4, window_bounds = array<i64: 32, 32>}, {pipeline_mode = #tpu.pipeline_mode<synchronous>, transform_indices = @transform_5, window_bounds = array<i64: 1, 32>}, {pipeline_mode = #tpu.pipeline_mode<synchronous>, transform_indices = @transform_6, window_bounds = array<i64: 32, 128>}, {pipeline_mode = #tpu.pipeline_mode<synchronous>, transform_indices = @transform_7, window_bounds = array<i64: 1, 128>}, {transform_indices = @transform_8, window_bounds = array<i64: 2, 8, 128>}]} {
    %c0 = arith.constant 0 : index
    %c0_0 = arith.constant 0 : index
    %c0_1 = arith.constant 0 : index
    %0 = vector.load %arg1[%c0, %c0_0, %c0_1] : memref<2x8x16xf32, #tpu.memory_space<vmem>>, vector<2x8x16xf32>
    %c0_2 = arith.constant 0 : index
    %c0_3 = arith.constant 0 : index
    %1 = vector.load %arg2[%c0_2, %c0_3] : memref<16x32xf32, #tpu.memory_space<vmem>>, vector<16x32xf32>
    %c0_4 = arith.constant 0 : index
    %c0_5 = arith.constant 0 : index
    %2 = vector.load %arg3[%c0_4, %c0_5] : memref<16x32xf32, #tpu.memory_space<vmem>>, vector<16x32xf32>
    %cst = arith.constant dense<0.000000e+00> : vector<2x16xf32>
    %3 = vector.multi_reduction <add>, %0, %cst [1] : vector<2x8x16xf32> to vector<2x16xf32>
    %cst_6 = arith.constant 8.000000e+00 : f32
    %4 = vector.broadcast %cst_6 : f32 to vector<2x16xf32>
    %5 = arith.divf %3, %4 : vector<2x16xf32>
    %6 = vector.shape_cast %0 : vector<2x8x16xf32> to vector<16x16xf32>
    %cst_7 = arith.constant dense<0.000000e+00> : vector<16x32xf32>
    %7 = tpu.matmul %6, %1, %cst_7 {dimension_numbers = #tpu.dot_dimension_numbers<[1], [0], [0], [1], [0, 0, 1, 1], [], []>} : vector<16x16xf32>, vector<16x32xf32>, vector<16x32xf32> -> vector<16x32xf32>
    %cst_8 = arith.constant dense<0.000000e+00> : vector<2x32xf32>
    %8 = tpu.matmul %5, %2, %cst_8 {dimension_numbers = #tpu.dot_dimension_numbers<[1], [0], [0], [1], [0, 0, 1, 1], [], []>} : vector<2x16xf32>, vector<16x32xf32>, vector<2x32xf32> -> vector<2x32xf32>
    %c0_9 = arith.constant 0 : index
    %c0_10 = arith.constant 0 : index
    %9 = vector.load %arg4[%c0_9, %c0_10] : memref<1x32xf32, #tpu.memory_space<vmem>>, vector<1x32xf32>
    %10 = vector.broadcast %9 : vector<1x32xf32> to vector<2x32xf32>
    %11 = arith.addf %8, %10 : vector<2x32xf32>
    %12 = vector.shape_cast %11 : vector<2x32xf32> to vector<2x1x32xf32>
    %13 = vector.shape_cast %12 : vector<2x1x32xf32> to vector<2x1x32xf32>
    %14 = vector.broadcast %13 : vector<2x1x32xf32> to vector<2x8x32xf32>
    %15 = vector.shape_cast %14 : vector<2x8x32xf32> to vector<16x32xf32>
    %16 = arith.addf %7, %15 : vector<16x32xf32>
    %cst_11 = arith.constant 0.000000e+00 : f32
    %17 = vector.broadcast %cst_11 : f32 to vector<16x32xf32>
    %18 = arith.minimumf %16, %17 : vector<16x32xf32>
    %19 = math.exp %18 : vector<16x32xf32>
    %cst_12 = arith.constant 1.000000e+00 : f32
    %20 = vector.broadcast %cst_12 : f32 to vector<16x32xf32>
    %21 = arith.subf %19, %20 : vector<16x32xf32>
    %cst_13 = arith.constant 1.67326319 : f32
    %22 = vector.broadcast %cst_13 : f32 to vector<16x32xf32>
    %23 = arith.mulf %22, %21 : vector<16x32xf32>
    %cst_14 = arith.constant 0.000000e+00 : f32
    %24 = vector.broadcast %cst_14 : f32 to vector<16x32xf32>
    %25 = arith.cmpf ogt, %16, %24 : vector<16x32xf32>
    %26 = arith.select %25, %16, %23 : vector<16x32xi1>, vector<16x32xf32>
    %cst_15 = arith.constant 1.05070102 : f32
    %27 = vector.broadcast %cst_15 : f32 to vector<16x32xf32>
    %28 = arith.mulf %27, %26 : vector<16x32xf32>
    %c0_16 = arith.constant 0 : index
    %c0_17 = arith.constant 0 : index
    %29 = vector.load %arg5[%c0_16, %c0_17] : memref<32x32xf32, #tpu.memory_space<vmem>>, vector<32x32xf32>
    %cst_18 = arith.constant dense<0.000000e+00> : vector<16x32xf32>
    %30 = tpu.matmul %28, %29, %cst_18 {dimension_numbers = #tpu.dot_dimension_numbers<[1], [0], [0], [1], [0, 0, 1, 1], [], []>} : vector<16x32xf32>, vector<32x32xf32>, vector<16x32xf32> -> vector<16x32xf32>
    %c0_19 = arith.constant 0 : index
    %c0_20 = arith.constant 0 : index
    %31 = vector.load %arg6[%c0_19, %c0_20] : memref<1x32xf32, #tpu.memory_space<vmem>>, vector<1x32xf32>
    %32 = vector.broadcast %31 : vector<1x32xf32> to vector<16x32xf32>
    %33 = arith.addf %30, %32 : vector<16x32xf32>
    %cst_21 = arith.constant 0.000000e+00 : f32
    %34 = vector.broadcast %cst_21 : f32 to vector<16x32xf32>
    %35 = arith.minimumf %33, %34 : vector<16x32xf32>
    %36 = math.exp %35 : vector<16x32xf32>
    %cst_22 = arith.constant 1.000000e+00 : f32
    %37 = vector.broadcast %cst_22 : f32 to vector<16x32xf32>
    %38 = arith.subf %36, %37 : vector<16x32xf32>
    %cst_23 = arith.constant 1.67326319 : f32
    %39 = vector.broadcast %cst_23 : f32 to vector<16x32xf32>
    %40 = arith.mulf %39, %38 : vector<16x32xf32>
    %cst_24 = arith.constant 0.000000e+00 : f32
    %41 = vector.broadcast %cst_24 : f32 to vector<16x32xf32>
    %42 = arith.cmpf ogt, %33, %41 : vector<16x32xf32>
    %43 = arith.select %42, %33, %40 : vector<16x32xi1>, vector<16x32xf32>
    %cst_25 = arith.constant 1.05070102 : f32
    %44 = vector.broadcast %cst_25 : f32 to vector<16x32xf32>
    %45 = arith.mulf %44, %43 : vector<16x32xf32>
    %c0_26 = arith.constant 0 : index
    %c0_27 = arith.constant 0 : index
    %46 = vector.load %arg7[%c0_26, %c0_27] : memref<32x128xf32, #tpu.memory_space<vmem>>, vector<32x128xf32>
    %cst_28 = arith.constant dense<0.000000e+00> : vector<16x128xf32>
    %47 = tpu.matmul %45, %46, %cst_28 {dimension_numbers = #tpu.dot_dimension_numbers<[1], [0], [0], [1], [0, 0, 1, 1], [], []>} : vector<16x32xf32>, vector<32x128xf32>, vector<16x128xf32> -> vector<16x128xf32>
    %c0_29 = arith.constant 0 : index
    %c0_30 = arith.constant 0 : index
    %48 = vector.load %arg8[%c0_29, %c0_30] : memref<1x128xf32, #tpu.memory_space<vmem>>, vector<1x128xf32>
    %49 = vector.broadcast %48 : vector<1x128xf32> to vector<16x128xf32>
    %50 = arith.addf %47, %49 : vector<16x128xf32>
    %51 = vector.shape_cast %50 : vector<16x128xf32> to vector<2x8x128xf32>
    %c0_31 = arith.constant 0 : index
    %c0_32 = arith.constant 0 : index
    %c0_33 = arith.constant 0 : index
    %52 = vector.load %arg9[%c0_31, %c0_32, %c0_33] : memref<2x8x128xf32, #tpu.memory_space<vmem>>, vector<2x8x128xf32>
    tpu.vector_store %arg9[%c0_31, %c0_32, %c0_33], %51 {strides = array<i32>} : memref<2x8x128xf32, #tpu.memory_space<vmem>>, vector<2x8x128xf32>,
    return
  }
  func.func @transform_0(%arg0: i32) -> (i32, i32, i32) {
    %c0_i32 = arith.constant 0 : i32
    %c0_i32_0 = arith.constant 0 : i32
    %c0_i32_1 = arith.constant 0 : i32
    return %arg0, %c0_i32, %c0_i32_0 : i32, i32, i32
  }
  func.func @transform_1(%arg0: i32) -> (i32, i32) {
    %c0_i32 = arith.constant 0 : i32
    %c0_i32_0 = arith.constant 0 : i32
    %c0_i32_1 = arith.constant 0 : i32
    return %c0_i32, %c0_i32_0 : i32, i32
  }
  func.func @transform_2(%arg0: i32) -> (i32, i32) {
    %c0_i32 = arith.constant 0 : i32
    %c0_i32_0 = arith.constant 0 : i32
    %c0_i32_1 = arith.constant 0 : i32
    return %c0_i32, %c0_i32_0 : i32, i32
  }
  func.func @transform_3(%arg0: i32) -> (i32, i32) {
    %c0_i32 = arith.constant 0 : i32
    %c0_i32_0 = arith.constant 0 : i32
    %c0_i32_1 = arith.constant 0 : i32
    return %c0_i32, %c0_i32_0 : i32, i32
  }
  func.func @transform_4(%arg0: i32) -> (i32, i32) {
    %c0_i32 = arith.constant 0 : i32
    %c0_i32_0 = arith.constant 0 : i32
    %c0_i32_1 = arith.constant 0 : i32
    return %c0_i32, %c0_i32_0 : i32, i32
  }
  func.func @transform_5(%arg0: i32) -> (i32, i32) {
    %c0_i32 = arith.constant 0 : i32
    %c0_i32_0 = arith.constant 0 : i32
    %c0_i32_1 = arith.constant 0 : i32
    return %c0_i32, %c0_i32_0 : i32, i32
  }
  func.func @transform_6(%arg0: i32) -> (i32, i32) {
    %c0_i32 = arith.constant 0 : i32
    %c0_i32_0 = arith.constant 0 : i32
    %c0_i32_1 = arith.constant 0 : i32
    return %c0_i32, %c0_i32_0 : i32, i32
  }
  func.func @transform_7(%arg0: i32) -> (i32, i32) {
    %c0_i32 = arith.constant 0 : i32
    %c0_i32_0 = arith.constant 0 : i32
    %c0_i32_1 = arith.constant 0 : i32
    return %c0_i32, %c0_i32_0 : i32, i32
  }
  func.func @transform_8(%arg0: i32) -> (i32, i32, i32) {
    %c0_i32 = arith.constant 0 : i32
    %c0_i32_0 = arith.constant 0 : i32
    %c0_i32_1 = arith.constant 0 : i32
    return %arg0, %c0_i32, %c0_i32_0 : i32, i32, i32
  }
}

</mosaic_0001>

<llo_original>
// kernel: tpu_custom_call.1
$region0: #{tpu_custom_call.1}
  #allocation0 [shape = 'u32[]', space=smem, size = 0x4, offset = 0x4, fixed_abs, tag = 'smem constant byte address 0x4 - core index']
  #allocation1 [shape = 'u32[144,128]{1,0:T(1,128)}', space=vmem, size = 0x12000, scoped, tag = 'internal scratch']
  %s0 = inlined_call_operand.hbm [shape: f32[2,8,16], index: 0, kind: input, shape index: {}]
  %s1 = inlined_call_operand.hbm [shape: f32[16,32], index: 1, kind: input, shape index: {}]
  %s2 = inlined_call_operand.hbm [shape: f32[16,32], index: 2, kind: input, shape index: {}]
  %s3 = inlined_call_operand.vmem [shape: f32[1,32], index: 3, kind: input, shape index: {}]
  %s4 = inlined_call_operand.hbm [shape: f32[32,32], index: 4, kind: input, shape index: {}]
  %s5 = inlined_call_operand.vmem [shape: f32[1,32], index: 5, kind: input, shape index: {}]
  %s6 = inlined_call_operand.hbm [shape: f32[32,128], index: 6, kind: input, shape index: {}]
  %s7 = inlined_call_operand.vmem [shape: f32[1,128], index: 7, kind: input, shape index: {}]
  %s8 = inlined_call_operand.hbm [shape: f32[2,8,128], index: 8, kind: output, shape index: {}]
  %s9 = sld [smem:[#allocation0]]
  $region62: #{tpu_custom_call.1} parent=0
    _
  %s11 = ssub.s32 1, %s9
  %s12 = scalar_select 0, %s11, %s9
  $region1: #{tpu_custom_call.1} parent=0
    #allocation2 [shape = 'u8[8192]{0}', space=vmem, size = 0x2000, scoped, tag = 'input window, operand 0, single buffered']
    #allocation3 [shape = 's32[1]{0}', space=sflag, size = 0x4, scoped, tag = 'scoped memory for tpu_custom_call.1']
    #allocation4 [shape = 's32[1]{0}', space=sflag, size = 0x4, scoped, tag = 'scoped memory for tpu_custom_call.1']
    #allocation5 [shape = 'u8[8192]{0}', space=vmem, size = 0x2000, scoped, tag = 'input window, operand 1, single buffered']
    #allocation6 [shape = 's32[1]{0}', space=sflag, size = 0x4, scoped, tag = 'scoped memory for tpu_custom_call.1']
    #allocation7 [shape = 'u8[8192]{0}', space=vmem, size = 0x2000, scoped, tag = 'input window, operand 2, single buffered']
    #allocation8 [shape = 'u8[16384]{0}', space=vmem, size = 0x4000, scoped, tag = 'input window, operand 4, single buffered']
    #allocation9 [shape = 's32[1]{0}', space=sflag, size = 0x4, scoped, tag = 'scoped memory for tpu_custom_call.1']
    #allocation10 [shape = 'u8[16384]{0}', space=vmem, size = 0x4000, scoped, tag = 'input window, operand 6, single buffered']
    #allocation11 [shape = 'u8[8192]{0}', space=vmem, size = 0x2000, scoped, tag = 'output window, operand 0, single buffered']
    %13 = vsyncpa [#allocation3], 0
    %14 = vsyncpa [#allocation6], 0
    %15 = vsyncpa [#allocation9], 0
    %16 = vsyncpa [#allocation4], 0
    // Predicated region
    $region2: #{tpu_custom_call.1} parent=1 // pred_check
      _
    $region3: #{tpu_custom_call.1} parent=1 // pred_check_branch
      %18 = sbr.rel (0) target = $region5
    $region4: #{tpu_custom_call.1} parent=1 // pred_region
      %s20 = ssub.s32 256, 256
      %21 = vsyncadd [#allocation3], %s20
      %s22 = sshll.u32 [#allocation2], 4
      %s23 = int_to_ptr.vmem [resolvable:$true] %s22
      %28 = dma.hbm_to_vmem [thread:$0]  %s0, 256, %s23, [#allocation3], 128, 128, 8
    $region5: #{tpu_custom_call.1} parent=1 // pred_fallthru
      _
    // Predicated region
    $region6: #{tpu_custom_call.1} parent=1 // pred_check
      _
    $region7: #{tpu_custom_call.1} parent=1 // pred_check_branch
      %30 = sbr.rel (0) target = $region9
    $region8: #{tpu_custom_call.1} parent=1 // pred_region
      %s32 = ssub.s32 256, 256
      %33 = vsyncadd [#allocation6], %s32
      %s34 = sshll.u32 [#allocation5], 4
      %s35 = int_to_ptr.vmem [resolvable:$true] %s34
      %40 = dma.hbm_to_vmem [thread:$0]  %s1, 256, %s35, [#allocation6], 128, 128, 8
    $region9: #{tpu_custom_call.1} parent=1 // pred_fallthru
      _
    // Predicated region
    $region10: #{tpu_custom_call.1} parent=1 // pred_check
      _
    $region11: #{tpu_custom_call.1} parent=1 // pred_check_branch
      %42 = sbr.rel (0) target = $region13
    $region12: #{tpu_custom_call.1} parent=1 // pred_region
      %s44 = ssub.s32 256, 256
      %45 = vsyncadd [#allocation6], %s44
      %s46 = sshll.u32 [#allocation7], 4
      %s47 = int_to_ptr.vmem [resolvable:$true] %s46
      %52 = dma.hbm_to_vmem [thread:$0]  %s2, 256, %s47, [#allocation6], 128, 128, 8
    $region13: #{tpu_custom_call.1} parent=1 // pred_fallthru
      _
    // Predicated region
    $region14: #{tpu_custom_call.1} parent=1 // pred_check
      _
    $region15: #{tpu_custom_call.1} parent=1 // pred_check_branch
      %54 = sbr.rel (0) target = $region17
    $region16: #{tpu_custom_call.1} parent=1 // pred_region
      _
    $region17: #{tpu_custom_call.1} parent=1 // pred_fallthru
      _
    // Predicated region
    $region18: #{tpu_custom_call.1} parent=1 // pred_check
      _
    $region19: #{tpu_custom_call.1} parent=1 // pred_check_branch
      %56 = sbr.rel (0) target = $region21
    $region20: #{tpu_custom_call.1} parent=1 // pred_region
      %s58 = ssub.s32 512, 512
      %59 = vsyncadd [#allocation9], %s58
      %s60 = sshll.u32 [#allocation8], 4
      %s61 = int_to_ptr.vmem [resolvable:$true] %s60
      %66 = dma.hbm_to_vmem [thread:$0]  %s4, 512, %s61, [#allocation9], 128, 128, 8
    $region21: #{tpu_custom_call.1} parent=1 // pred_fallthru
      _
    // Predicated region
    $region22: #{tpu_custom_call.1} parent=1 // pred_check
      _
    $region23: #{tpu_custom_call.1} parent=1 // pred_check_branch
      %68 = sbr.rel (0) target = $region25
    $region24: #{tpu_custom_call.1} parent=1 // pred_region
      _
    $region25: #{tpu_custom_call.1} parent=1 // pred_fallthru
      _
    // Predicated region
    $region26: #{tpu_custom_call.1} parent=1 // pred_check
      _
    $region27: #{tpu_custom_call.1} parent=1 // pred_check_branch
      %70 = sbr.rel (0) target = $region29
    $region28: #{tpu_custom_call.1} parent=1 // pred_region
      %s72 = ssub.s32 512, 512
      %73 = vsyncadd [#allocation9], %s72
      %s74 = sshll.u32 [#allocation10], 4
      %s75 = int_to_ptr.vmem [resolvable:$true] %s74
      %80 = dma.hbm_to_vmem [thread:$0]  %s6, 512, %s75, [#allocation9], 128, 128, 8
    $region29: #{tpu_custom_call.1} parent=1 // pred_fallthru
      _
    // Predicated region
    $region30: #{tpu_custom_call.1} parent=1 // pred_check
      _
    $region31: #{tpu_custom_call.1} parent=1 // pred_check_branch
      %82 = sbr.rel (0) target = $region33
    $region32: #{tpu_custom_call.1} parent=1 // pred_region
      _
    $region33: #{tpu_custom_call.1} parent=1 // pred_fallthru
      _
    // Predicated region
    $region34: #{tpu_custom_call.1} parent=1 // pred_check
      _
    $region35: #{tpu_custom_call.1} parent=1 // pred_check_branch
      %84 = sbr.rel (0) target = $region37
    $region36: #{tpu_custom_call.1} parent=1 // pred_region
      %85 = dma.done [#allocation3], 256
    $region37: #{tpu_custom_call.1} parent=1 // pred_fallthru
      _
    // Predicated region
    $region38: #{tpu_custom_call.1} parent=1 // pred_check
      _
    $region39: #{tpu_custom_call.1} parent=1 // pred_check_branch
      %87 = sbr.rel (0) target = $region41
    $region40: #{tpu_custom_call.1} parent=1 // pred_region
      %88 = dma.done [#allocation6], 256
    $region41: #{tpu_custom_call.1} parent=1 // pred_fallthru
      _
    // Predicated region
    $region42: #{tpu_custom_call.1} parent=1 // pred_check
      _
    $region43: #{tpu_custom_call.1} parent=1 // pred_check_branch
      %90 = sbr.rel (0) target = $region45
    $region44: #{tpu_custom_call.1} parent=1 // pred_region
      %91 = dma.done [#allocation6], 256
    $region45: #{tpu_custom_call.1} parent=1 // pred_fallthru
      _
    // Predicated region
    $region46: #{tpu_custom_call.1} parent=1 // pred_check
      _
    $region47: #{tpu_custom_call.1} parent=1 // pred_check_branch
      %93 = sbr.rel (0) target = $region49
    $region48: #{tpu_custom_call.1} parent=1 // pred_region
      %94 = dma.done [#allocation9], 512
    $region49: #{tpu_custom_call.1} parent=1 // pred_fallthru
      _
    // Predicated region
    $region50: #{tpu_custom_call.1} parent=1 // pred_check
      _
    $region51: #{tpu_custom_call.1} parent=1 // pred_check_branch
      %96 = sbr.rel (0) target = $region53
    $region52: #{tpu_custom_call.1} parent=1 // pred_region
      %97 = dma.done [#allocation9], 512
    $region53: #{tpu_custom_call.1} parent=1 // pred_fallthru
      _
    %v98 = vld [vmem:[#allocation2] sm:$0xff]
    %v99 = vld [vmem:[#allocation2 + $0x8] sm:$0xff]
    %v100 = vld [vmem:[#allocation5] sm:$0xff]
    %v101 = vld [vmem:[#allocation5 + $0x8] sm:$0xff]
    %v102 = vld [vmem:[#allocation7] sm:$0xff]
    %v103 = vld [vmem:[#allocation7 + $0x8] sm:$0xff]
    %vm104 = vcmask 130048
    %v105 = vsel %vm104, %v98, 0.0
    %v106 = vrot.slane %v105, 4
    %v107 = vadd.f32 %v105, %v106
    %v108 = vrot.slane %v107, 2
    %v109 = vadd.f32 %v107, %v108
    %v110 = vrot.slane %v109, 1
    %v111 = vadd.f32 %v109, %v110
    %v112 = vsel %vm104, %v99, 0.0
    %v113 = vrot.slane %v112, 4
    %v114 = vadd.f32 %v112, %v113
    %v115 = vrot.slane %v114, 2
    %v116 = vadd.f32 %v114, %v115
    %v117 = vrot.slane %v116, 1
    %v118 = vadd.f32 %v116, %v117
    %v119 = vrcp.pop 8.0
    %v120 = vmul.f32 %v111, %v119
    %v121 = vmul.f32 %v118, %v119
    %v122 = vld [vmem:[%s3] sm:$0x1]
    %v124 = vlaneseq
    %v125 = vshrl.u32 %v124, 7
    %v126 = vsub.s32 0, %v125
    %v127 = vrot.slane %v122, %v126
    %vm131 = vcmask 1041409
    %v132 = vsel %vm131, %v121, %v120
    %v133 = vsel %vm104, %v132, 0
    %135 = vmatprep.subr.mxu0 0.0
    %136 = vmatpush1.msra.mxu0 %v102
    %137 = vmatprep.subr.mxu0 0.0
    %138 = vmatpush1.msra.mxu0 %v103
    %139 = vmatprep.subr.mxu0 0.0
    %140 = vmatpush1.msra.mxu0 0.0
    %141 = vmatprep.subr.mxu0 0.0
    %142 = vmatpush1.msra.mxu0 0.0
    %143 = vmatprep.subr.mxu0 0.0
    %144 = vmatpush1.msra.mxu0 0.0
    %145 = vmatprep.subr.mxu0 0.0
    %146 = vmatpush1.msra.mxu0 0.0
    %147 = vmatprep.subr.mxu0 0.0
    %148 = vmatpush1.msra.mxu0 0.0
    %149 = vmatprep.subr.mxu0 0.0
    %150 = vmatpush1.msra.mxu0 0.0
    %151 = vmatprep.subr.mxu0 0.0
    %152 = vmatpush1.msra.mxu0 0.0
    %153 = vmatprep.subr.mxu0 0.0
    %154 = vmatpush1.msra.mxu0 0.0
    %155 = vmatprep.subr.mxu0 0.0
    %156 = vmatpush1.msra.mxu0 0.0
    %157 = vmatprep.subr.mxu0 0.0
    %158 = vmatpush1.msra.mxu0 0.0
    %159 = vmatprep.subr.mxu0 0.0
    %160 = vmatpush1.msra.mxu0 0.0
    %161 = vmatprep.subr.mxu0 0.0
    %162 = vmatpush1.msra.mxu0 0.0
    %163 = vmatprep.subr.mxu0 0.0
    %164 = vmatpush1.msra.mxu0 0.0
    %165 = vmatprep.subr.mxu0 0.0
    %166 = vmatpush1.msra.mxu0 0.0
    %167 = vmatprep.subr.mxu0 0.0
    %168 = vmatpush1.msra.mxu0 0.0
    %169 = vmatprep.subr.mxu0 0.0
    %170 = vmatpush1.msra.mxu0 0.0
    %171 = vmatprep.subr.mxu0 0.0
    %172 = vmatpush1.msra.mxu0 0.0
    %173 = vmatprep.subr.mxu0 0.0
    %174 = vmatpush1.msra.mxu0 0.0
    %175 = vmatprep.subr.mxu0 0.0
    %176 = vmatpush1.msra.mxu0 0.0
    %177 = vmatprep.subr.mxu0 0.0
    %178 = vmatpush1.msra.mxu0 0.0
    %179 = vmatprep.subr.mxu0 0.0
    %180 = vmatpush1.msra.mxu0 0.0
    %181 = vmatprep.subr.mxu0 0.0
    %182 = vmatpush1.msra.mxu0 0.0
    %183 = vmatprep.subr.mxu0 0.0
    %184 = vmatpush1.msra.mxu0 0.0
    %185 = vmatprep.subr.mxu0 0.0
    %186 = vmatpush1.msra.mxu0 0.0
    %187 = vmatprep.subr.mxu0 0.0
    %188 = vmatpush1.msra.mxu0 0.0
    %189 = vmatprep.subr.mxu0 0.0
    %190 = vmatpush1.msra.mxu0 0.0
    %191 = vmatprep.subr.mxu0 0.0
    %192 = vmatpush1.msra.mxu0 0.0
    %193 = vmatprep.subr.mxu0 0.0
    %194 = vmatpush1.msra.mxu0 0.0
    %195 = vmatprep.subr.mxu0 0.0
    %196 = vmatpush1.msra.mxu0 0.0
    %197 = vmatprep.subr.mxu0 0.0
    %198 = vmatpush1.msra.mxu0 0.0
    %199 = vmatprep.mubr.f32.mxu0 0.0
    %200 = vmatmul.mubr.f32.gmra.mrb[0].mxu0 %v133
    %v201 = vpop.f32.mrb[0].mxu0
    %v202 = vadd.f32 %v127, %v201
    %v203 = vpop.f32.mrb[0].mxu0
    %204 = vdwg.mxu0
    %v207 = vunpack.c.l.s4 1966171168
    %v208 = vunpack.c.0.s8 %v207
    %v209 = vlaneseq
    %v210 = vshrl.u32 %v209, 7
    %v211 = vsub.s32 %v208, %v210
    %v212 = vrot.slane %v202, %v211
    %v213 = vcombine.high %v212, %v212
    %v215 = vunpack.c.l.s4 1966171168
    %v216 = vunpack.c.0.s8 %v215
    %v217 = vlaneseq
    %v218 = vshrl.u32 %v217, 7
    %v219 = vsub.s32 %v216, %v218
    %v220 = vrot.slane %v212, %v219
    %v222 = vunpack.c.l.s4 1966171168
    %v223 = vunpack.c.0.s8 %v222
    %v224 = vlaneseq
    %v225 = vshrl.u32 %v224, 7
    %v226 = vsub.s32 %v223, %v225
    %v227 = vrot.slane %v213, %v226
    %v228 = vlaneseq
    %v229 = vshrl.u32 %v228, 7
    %v230 = vsub.s32 0, %v229
    %v231 = vrot.slane %v220, %v230
    %v232 = vlaneseq
    %v233 = vshrl.u32 %v232, 7
    %v234 = vsub.s32 0, %v233
    %v235 = vrot.slane %v227, %v234
    %v239 = vsel %vm104, %v98, 0
    %v242 = vsel %vm104, %v99, 0
    %244 = vmatprep.subr.mxu0 0.0
    %245 = vmatpush1.msra.mxu0 %v100
    %246 = vmatprep.subr.mxu0 0.0
    %247 = vmatpush1.msra.mxu0 %v101
    %248 = vmatprep.subr.mxu0 0.0
    %249 = vmatpush1.msra.mxu0 0.0
    %250 = vmatprep.subr.mxu0 0.0
    %251 = vmatpush1.msra.mxu0 0.0
    %252 = vmatprep.subr.mxu0 0.0
    %253 = vmatpush1.msra.mxu0 0.0
    %254 = vmatprep.subr.mxu0 0.0
    %255 = vmatpush1.msra.mxu0 0.0
    %256 = vmatprep.subr.mxu0 0.0
    %257 = vmatpush1.msra.mxu0 0.0
    %258 = vmatprep.subr.mxu0 0.0
    %259 = vmatpush1.msra.mxu0 0.0
    %260 = vmatprep.subr.mxu0 0.0
    %261 = vmatpush1.msra.mxu0 0.0
    %262 = vmatprep.subr.mxu0 0.0
    %263 = vmatpush1.msra.mxu0 0.0
    %264 = vmatprep.subr.mxu0 0.0
    %265 = vmatpush1.msra.mxu0 0.0
    %266 = vmatprep.subr.mxu0 0.0
    %267 = vmatpush1.msra.mxu0 0.0
    %268 = vmatprep.subr.mxu0 0.0
    %269 = vmatpush1.msra.mxu0 0.0
    %270 = vmatprep.subr.mxu0 0.0
    %271 = vmatpush1.msra.mxu0 0.0
    %272 = vmatprep.subr.mxu0 0.0
    %273 = vmatpush1.msra.mxu0 0.0
    %274 = vmatprep.subr.mxu0 0.0
    %275 = vmatpush1.msra.mxu0 0.0
    %276 = vmatprep.subr.mxu0 0.0
    %277 = vmatpush1.msra.mxu0 0.0
    %278 = vmatprep.subr.mxu0 0.0
    %279 = vmatpush1.msra.mxu0 0.0
    %280 = vmatprep.subr.mxu0 0.0
    %281 = vmatpush1.msra.mxu0 0.0
    %282 = vmatprep.subr.mxu0 0.0
    %283 = vmatpush1.msra.mxu0 0.0
    %284 = vmatprep.subr.mxu0 0.0
    %285 = vmatpush1.msra.mxu0 0.0
    %286 = vmatprep.subr.mxu0 0.0
    %287 = vmatpush1.msra.mxu0 0.0
    %288 = vmatprep.subr.mxu0 0.0
    %289 = vmatpush1.msra.mxu0 0.0
    %290 = vmatprep.subr.mxu0 0.0
    %291 = vmatpush1.msra.mxu0 0.0
    %292 = vmatprep.subr.mxu0 0.0
    %293 = vmatpush1.msra.mxu0 0.0
    %294 = vmatprep.subr.mxu0 0.0
    %295 = vmatpush1.msra.mxu0 0.0
    %296 = vmatprep.subr.mxu0 0.0
    %297 = vmatpush1.msra.mxu0 0.0
    %298 = vmatprep.subr.mxu0 0.0
    %299 = vmatpush1.msra.mxu0 0.0
    %300 = vmatprep.subr.mxu0 0.0
    %301 = vmatpush1.msra.mxu0 0.0
    %302 = vmatprep.subr.mxu0 0.0
    %303 = vmatpush1.msra.mxu0 0.0
    %304 = vmatprep.subr.mxu0 0.0
    %305 = vmatpush1.msra.mxu0 0.0
    %306 = vmatprep.subr.mxu0 0.0
    %307 = vmatpush1.msra.mxu0 0.0
    %308 = vmatprep.mubr.f32.mxu0 0.0
    %309 = vmatmul.mubr.f32.gmra.mrb[0].mxu0 %v239
    %v310 = vpop.f32.mrb[0].mxu0
    %v311 = vadd.f32 %v231, %v310
    %v312 = vpop.f32.mrb[0].mxu0
    %313 = vmatprep.mubr.f32.mxu0 0.0
    %314 = vmatmul.mubr.f32.gmra.mrb[0].mxu0 %v242
    %v315 = vpop.f32.mrb[0].mxu0
    %v316 = vadd.f32 %v235, %v315
    %v317 = vpop.f32.mrb[0].mxu0
    %318 = vdwg.mxu0
    %v319 = vmin.f32 %v311, 0.0
    %v320 = vmin.f32 %v316, 0.0
    %v321 = vmul.f32 %v319, 1.442695
    %v322 = vpow.pop %v321
    %v323 = vmul.f32 %v320, 1.442695
    %v324 = vpow.pop %v323
    %v325 = vsub.f32 %v322, 1.0
    %v326 = vsub.f32 %v324, 1.0
    %v327 = vmul.f32 %v325, 1.6732632
    %v328 = vmul.f32 %v326, 1.6732632
    %vm329 = vcmp.gt.f32.partialorder %v311, 0.0
    %vm330 = vcmp.gt.f32.partialorder %v316, 0.0
    %v331 = vsel %vm329, %v311, %v327
    %v332 = vsel %vm330, %v316, %v328
    %v333 = vmul.f32 %v331, 1.050701
    %v334 = vmul.f32 %v332, 1.050701
    %v335 = vld [vmem:[#allocation8] sm:$0xff]
    %v336 = vld [vmem:[#allocation8 + $0x8] sm:$0xff]
    %v337 = vld [vmem:[#allocation8 + $0x10] sm:$0xff]
    %v338 = vld [vmem:[#allocation8 + $0x18] sm:$0xff]
    %v339 = vld [vmem:[%s5] sm:$0x1]
    %v341 = vlaneseq
    %v342 = vshrl.u32 %v341, 7
    %v343 = vsub.s32 0, %v342
    %v344 = vrot.slane %v339, %v343
    %vm346 = vcmask 261120
    %v348 = vsel %vm346, %v333, 0
    %v351 = vsel %vm346, %v334, 0
    %353 = vmatprep.subr.mxu0 0.0
    %354 = vmatpush1.msra.mxu0 %v335
    %355 = vmatprep.subr.mxu0 0.0
    %356 = vmatpush1.msra.mxu0 %v336
    %357 = vmatprep.subr.mxu0 0.0
    %358 = vmatpush1.msra.mxu0 %v337
    %359 = vmatprep.subr.mxu0 0.0
    %360 = vmatpush1.msra.mxu0 %v338
    %361 = vmatprep.subr.mxu0 0.0
    %362 = vmatpush1.msra.mxu0 0.0
    %363 = vmatprep.subr.mxu0 0.0
    %364 = vmatpush1.msra.mxu0 0.0
    %365 = vmatprep.subr.mxu0 0.0
    %366 = vmatpush1.msra.mxu0 0.0
    %367 = vmatprep.subr.mxu0 0.0
    %368 = vmatpush1.msra.mxu0 0.0
    %369 = vmatprep.subr.mxu0 0.0
    %370 = vmatpush1.msra.mxu0 0.0
    %371 = vmatprep.subr.mxu0 0.0
    %372 = vmatpush1.msra.mxu0 0.0
    %373 = vmatprep.subr.mxu0 0.0
    %374 = vmatpush1.msra.mxu0 0.0
    %375 = vmatprep.subr.mxu0 0.0
    %376 = vmatpush1.msra.mxu0 0.0
    %377 = vmatprep.subr.mxu0 0.0
    %378 = vmatpush1.msra.mxu0 0.0
    %379 = vmatprep.subr.mxu0 0.0
    %380 = vmatpush1.msra.mxu0 0.0
    %381 = vmatprep.subr.mxu0 0.0
    %382 = vmatpush1.msra.mxu0 0.0
    %383 = vmatprep.subr.mxu0 0.0
    %384 = vmatpush1.msra.mxu0 0.0
    %385 = vmatprep.subr.mxu0 0.0
    %386 = vmatpush1.msra.mxu0 0.0
    %387 = vmatprep.subr.mxu0 0.0
    %388 = vmatpush1.msra.mxu0 0.0
    %389 = vmatprep.subr.mxu0 0.0
    %390 = vmatpush1.msra.mxu0 0.0
    %391 = vmatprep.subr.mxu0 0.0
    %392 = vmatpush1.msra.mxu0 0.0
    %393 = vmatprep.subr.mxu0 0.0
    %394 = vmatpush1.msra.mxu0 0.0
    %395 = vmatprep.subr.mxu0 0.0
    %396 = vmatpush1.msra.mxu0 0.0
    %397 = vmatprep.subr.mxu0 0.0
    %398 = vmatpush1.msra.mxu0 0.0
    %399 = vmatprep.subr.mxu0 0.0
    %400 = vmatpush1.msra.mxu0 0.0
    %401 = vmatprep.subr.mxu0 0.0
    %402 = vmatpush1.msra.mxu0 0.0
    %403 = vmatprep.subr.mxu0 0.0
    %404 = vmatpush1.msra.mxu0 0.0
    %405 = vmatprep.subr.mxu0 0.0
    %406 = vmatpush1.msra.mxu0 0.0
    %407 = vmatprep.subr.mxu0 0.0
    %408 = vmatpush1.msra.mxu0 0.0
    %409 = vmatprep.subr.mxu0 0.0
    %410 = vmatpush1.msra.mxu0 0.0
    %411 = vmatprep.subr.mxu0 0.0
    %412 = vmatpush1.msra.mxu0 0.0
    %413 = vmatprep.subr.mxu0 0.0
    %414 = vmatpush1.msra.mxu0 0.0
    %415 = vmatprep.subr.mxu0 0.0
    %416 = vmatpush1.msra.mxu0 0.0
    %417 = vmatprep.mubr.f32.mxu0 0.0
    %418 = vmatmul.mubr.f32.gmra.mrb[0].mxu0 %v348
    %v419 = vpop.f32.mrb[0].mxu0
    %v420 = vadd.f32 %v344, %v419
    %v421 = vpop.f32.mrb[0].mxu0
    %422 = vmatprep.mubr.f32.mxu0 0.0
    %423 = vmatmul.mubr.f32.gmra.mrb[0].mxu0 %v351
    %v424 = vpop.f32.mrb[0].mxu0
    %v425 = vadd.f32 %v344, %v424
    %v426 = vpop.f32.mrb[0].mxu0
    %427 = vdwg.mxu0
    %v428 = vmin.f32 %v420, 0.0
    %v429 = vmin.f32 %v425, 0.0
    %v430 = vmul.f32 %v428, 1.442695
    %v431 = vpow.pop %v430
    %v432 = vmul.f32 %v429, 1.442695
    %v433 = vpow.pop %v432
    %v434 = vsub.f32 %v431, 1.0
    %v435 = vsub.f32 %v433, 1.0
    %v436 = vmul.f32 %v434, 1.6732632
    %v437 = vmul.f32 %v435, 1.6732632
    %vm438 = vcmp.gt.f32.partialorder %v420, 0.0
    %vm439 = vcmp.gt.f32.partialorder %v425, 0.0
    %v440 = vsel %vm438, %v420, %v436
    %v441 = vsel %vm439, %v425, %v437
    %v442 = vmul.f32 %v440, 1.050701
    %v443 = vmul.f32 %v441, 1.050701
    %v444 = vld [vmem:[#allocation10] sm:$0xff]
    %v445 = vld [vmem:[#allocation10 + $0x8] sm:$0xff]
    %v446 = vld [vmem:[#allocation10 + $0x10] sm:$0xff]
    %v447 = vld [vmem:[#allocation10 + $0x18] sm:$0xff]
    %v448 = vld [vmem:[%s7] sm:$0x1]
    %v450 = vlaneseq
    %v451 = vshrl.u32 %v450, 7
    %v452 = vsub.s32 0, %v451
    %v453 = vrot.slane %v448, %v452
    %v456 = vsel %vm346, %v442, 0
    %v459 = vsel %vm346, %v443, 0
    %461 = vmatprep.subr.mxu0 0.0
    %462 = vmatpush1.msra.mxu0 %v444
    %463 = vmatprep.subr.mxu0 0.0
    %464 = vmatpush1.msra.mxu0 %v445
    %465 = vmatprep.subr.mxu0 0.0
    %466 = vmatpush1.msra.mxu0 %v446
    %467 = vmatprep.subr.mxu0 0.0
    %468 = vmatpush1.msra.mxu0 %v447
    %469 = vmatprep.subr.mxu0 0.0
    %470 = vmatpush1.msra.mxu0 0.0
    %471 = vmatprep.subr.mxu0 0.0
    %472 = vmatpush1.msra.mxu0 0.0
    %473 = vmatprep.subr.mxu0 0.0
    %474 = vmatpush1.msra.mxu0 0.0
    %475 = vmatprep.subr.mxu0 0.0
    %476 = vmatpush1.msra.mxu0 0.0
    %477 = vmatprep.subr.mxu0 0.0
    %478 = vmatpush1.msra.mxu0 0.0
    %479 = vmatprep.subr.mxu0 0.0
    %480 = vmatpush1.msra.mxu0 0.0
    %481 = vmatprep.subr.mxu0 0.0
    %482 = vmatpush1.msra.mxu0 0.0
    %483 = vmatprep.subr.mxu0 0.0
    %484 = vmatpush1.msra.mxu0 0.0
    %485 = vmatprep.subr.mxu0 0.0
    %486 = vmatpush1.msra.mxu0 0.0
    %487 = vmatprep.subr.mxu0 0.0
    %488 = vmatpush1.msra.mxu0 0.0
    %489 = vmatprep.subr.mxu0 0.0
    %490 = vmatpush1.msra.mxu0 0.0
    %491 = vmatprep.subr.mxu0 0.0
    %492 = vmatpush1.msra.mxu0 0.0
    %493 = vmatprep.subr.mxu0 0.0
    %494 = vmatpush1.msra.mxu0 0.0
    %495 = vmatprep.subr.mxu0 0.0
    %496 = vmatpush1.msra.mxu0 0.0
    %497 = vmatprep.subr.mxu0 0.0
    %498 = vmatpush1.msra.mxu0 0.0
    %499 = vmatprep.subr.mxu0 0.0
    %500 = vmatpush1.msra.mxu0 0.0
    %501 = vmatprep.subr.mxu0 0.0
    %502 = vmatpush1.msra.mxu0 0.0
    %503 = vmatprep.subr.mxu0 0.0
    %504 = vmatpush1.msra.mxu0 0.0
    %505 = vmatprep.subr.mxu0 0.0
    %506 = vmatpush1.msra.mxu0 0.0
    %507 = vmatprep.subr.mxu0 0.0
    %508 = vmatpush1.msra.mxu0 0.0
    %509 = vmatprep.subr.mxu0 0.0
    %510 = vmatpush1.msra.mxu0 0.0
    %511 = vmatprep.subr.mxu0 0.0
    %512 = vmatpush1.msra.mxu0 0.0
    %513 = vmatprep.subr.mxu0 0.0
    %514 = vmatpush1.msra.mxu0 0.0
    %515 = vmatprep.subr.mxu0 0.0
    %516 = vmatpush1.msra.mxu0 0.0
    %517 = vmatprep.subr.mxu0 0.0
    %518 = vmatpush1.msra.mxu0 0.0
    %519 = vmatprep.subr.mxu0 0.0
    %520 = vmatpush1.msra.mxu0 0.0
    %521 = vmatprep.subr.mxu0 0.0
    %522 = vmatpush1.msra.mxu0 0.0
    %523 = vmatprep.subr.mxu0 0.0
    %524 = vmatpush1.msra.mxu0 0.0
    %525 = vmatprep.mubr.f32.mxu0 0.0
    %526 = vmatmul.mubr.f32.gmra.mrb[0].mxu0 %v456
    %v527 = vpop.f32.mrb[0].mxu0
    %v528 = vadd.f32 %v453, %v527
    %v529 = vpop.f32.mrb[0].mxu0
    %530 = vmatprep.mubr.f32.mxu0 0.0
    %531 = vmatmul.mubr.f32.gmra.mrb[0].mxu0 %v459
    %v532 = vpop.f32.mrb[0].mxu0
    %v533 = vadd.f32 %v453, %v532
    %v534 = vpop.f32.mrb[0].mxu0
    %535 = vdwg.mxu0
    %536 = vst [vmem:[#allocation11] sm:$0xff] %v528
    %537 = vst [vmem:[#allocation11 + $0x8] sm:$0xff] %v533
    // Predicated region
    $region54: #{tpu_custom_call.1} parent=1 // pred_check
      _
    $region55: #{tpu_custom_call.1} parent=1 // pred_check_branch
      %539 = sbr.rel (0) target = $region57
    $region56: #{tpu_custom_call.1} parent=1 // pred_region
      %s541 = ssub.s32 256, 256
      %542 = vsyncadd [#allocation4], %s541
      %s543 = sshll.u32 [#allocation11], 4
      %s544 = int_to_ptr.vmem [resolvable:$true] %s543
      %549 = dma.vmem_to_hbm [thread:$0]  %s544, 256, %s8, [#allocation4], 128, 128, 8
    $region57: #{tpu_custom_call.1} parent=1 // pred_fallthru
      _
    // Predicated region
    $region58: #{tpu_custom_call.1} parent=1 // pred_check
      _
    $region59: #{tpu_custom_call.1} parent=1 // pred_check_branch
      %551 = sbr.rel (0) target = $region61
    $region60: #{tpu_custom_call.1} parent=1 // pred_region
      %552 = dma.done [#allocation4], 256
    $region61: #{tpu_custom_call.1} parent=1 // pred_fallthru
      _
    %553 = vsyncpa [#allocation3], 1
    %554 = vsyncpa [#allocation6], 1
    %555 = vsyncpa [#allocation9], 1
    %556 = vsyncpa [#allocation4], 1

</llo_original>
